<compile_context>
chip_gen: v6e
topology: v6e:2x2x1
jax: 0.10.0
libtpu: 0.0.40
codegen_flags: <defaults>
</compile_context>

<pallas_src>
import functools

import jax
import jax.numpy as jnp
from jax.experimental import pallas as pl
from jax.experimental.pallas import tpu as pltpu


def _round_up(x, m):
  return (x + m - 1) // m * m


@functools.lru_cache(maxsize=None)
def _pltpu_roll_matches_jnp() -> bool:
  """Tiny probe kernel that pins down pltpu.roll's shift direction."""
  def probe(x_ref, o_ref):
    o_ref[...] = pltpu.roll(x_ref[...], 3, axis=1)

  x = jnp.tile(jnp.arange(256, dtype=jnp.float32)[None, :], (8, 1))
  out = pl.pallas_call(
      probe,
      out_shape=jax.ShapeDtypeStruct((8, 256), jnp.float32),
      in_specs=[pl.BlockSpec(memory_space=pltpu.MemorySpace.VMEM)],
      out_specs=pl.BlockSpec(memory_space=pltpu.MemorySpace.VMEM),
  )(x)
  return bool(jnp.allclose(out, jnp.roll(x, 3, axis=1)))


def _residual_block_kernel(
    x_ref,                               # (Cp, P) padded activations
    w1_ref, b1_ref, g1_ref, beta1_ref,   # fused conv1 + bn1 params
    w2_ref, b2_ref, g2_ref, beta2_ref,   # fused conv2 + bn2 params
    out_ref,                             # (Cp, P)
    *, H, W, res_weight, eps, roll_fwd,
):
  Cp, P = x_ref.shape

  # (h, w) coordinates of every flattened N*H*W position (computed once).
  pos = jax.lax.broadcasted_iota(jnp.int32, (1, P), 1)
  w_idx = pos % W
  h_idx = (pos // W) % H

  offsets = [(dy, dx) for dy in (-1, 0, 1) for dx in (-1, 0, 1)]
  masks = []
  for dy, dx in offsets:
    conds = []
    if dy != 0:
      conds.append(jnp.logical_and(h_idx + dy >= 0, h_idx + dy <= H - 1))
    if dx != 0:
      conds.append(jnp.logical_and(w_idx + dx >= 0, w_idx + dx <= W - 1))
    if not conds:
      masks.append(None)                 # center tap: mask is all-ones
      continue
    m = conds[0]
    for c in conds[1:]:
      m = jnp.logical_and(m, c)
    masks.append(m.astype(jnp.float32))

  def fused_conv(src, w_ref, b_ref):
    # y[:, p] = sum_k W_k @ tap_k   with tap_k[c, p] = src[c, p + dy*W + dx]
    # (zero at image borders).  Valid positions never cross an image boundary,
    # so a flattened roll + border mask is exact; wrap-around values only land
    # on masked positions.  Each tap is fed straight into an accumulating MXU
    # matmul -- no im2col scratch, no extra VMEM round-trip.
    y = None
    for k, (dy, dx) in enumerate(offsets):
      s = dy * W + dx
      if s == 0:
        tap = src
      else:
        shift = (-s if roll_fwd else s) % P
        tap = pltpu.roll(src, shift, axis=1)
      if masks[k] is not None:
        tap = tap * masks[k]
      contrib = jnp.dot(w_ref[k], tap, preferred_element_type=jnp.float32)
      y = contrib if y is None else y + contrib
    return y + b_ref[...]

  def batchnorm(y, g_ref, beta_ref):
    # Training-mode BN; the lane axis spans the full (N, H, W) batch.
    mean = jnp.mean(y, axis=1, keepdims=True)
    d = y - mean
    var = jnp.mean(d * d, axis=1, keepdims=True)
    return d * jax.lax.rsqrt(var + eps) * g_ref[...] + beta_ref[...]

  # conv1 -> bn1 -> relu
  y = fused_conv(x_ref[...], w1_ref, b1_ref)
  y = jnp.maximum(batchnorm(y, g1_ref, beta1_ref), 0.0)
  # conv2 -> bn2
  y = fused_conv(y, w2_ref, b2_ref)
  y = batchnorm(y, g2_ref, beta2_ref)
  # out += weight * identity ; relu   (x re-read from VMEM, not kept live)
  y = jnp.maximum(y + res_weight * x_ref[...], 0.0)
  out_ref[...] = y.astype(out_ref.dtype)


def residual_block(x_nchw, params, *, weight=0.5, eps=1e-5):
  """ResidualBlock forward.  x_nchw: (N, C, H, W) float32 (PyTorch layout)."""
  (dw1_w, dw1_b, pw1_w, pw1_b, bn1_g, bn1_b,
   dw2_w, dw2_b, pw2_w, pw2_b, bn2_g, bn2_b) = params
  N, C, H, W = x_nchw.shape
  if pw1_w.shape[0] != C or pw2_w.shape[0] != C:
    raise ValueError("residual add requires in_channels == out_channels")
  P = N * H * W
  Cp = _round_up(C, 8)           # sublane-aligned channel count

  def fuse_and_pad(dw_w, dw_b, pw_w, pw_b):
    # dw_w: (C,1,3,3), dw_b: (C,), pw_w: (C,C,1,1), pw_b: (C,)
    # Fused weight W[k, cout, cin] = pw[cout, cin] * dw[cin, k], k = ky*3+kx.
    dwf = dw_w.reshape(C, 9).transpose(1, 0)             # (9, Cin)
    pw = pw_w.reshape(C, C)                              # (Cout, Cin)
    w = pw[None, :, :] * dwf[:, None, :]                 # (9, Cout, Cin)
    w = jnp.pad(w, ((0, 0), (0, Cp - C), (0, Cp - C)))   # (9, Cp, Cp)
    b = jnp.pad(pw_b + pw @ dw_b, (0, Cp - C)).reshape(Cp, 1)
    return w.astype(jnp.float32), b.astype(jnp.float32)

  def colpad(v):
    return jnp.pad(v.astype(jnp.float32), (0, Cp - C)).reshape(Cp, 1)

  w1, b1 = fuse_and_pad(dw1_w, dw1_b, pw1_w, pw1_b)
  w2, b2 = fuse_and_pad(dw2_w, dw2_b, pw2_w, pw2_b)

  # lane-dense layout: padded channels on sublanes, flattened N*H*W on lanes.
  x2d = x_nchw.astype(jnp.float32).transpose(1, 0, 2, 3).reshape(C, P)
  x2d = jnp.pad(x2d, ((0, Cp - C), (0, 0)))

  kernel = functools.partial(
      _residual_block_kernel, H=H, W=W, res_weight=weight, eps=eps,
      roll_fwd=_pltpu_roll_matches_jnp())

  vmem = pl.BlockSpec(memory_space=pltpu.MemorySpace.VMEM)
  flops = 2 * (2 * Cp * 9 * Cp * P) + 16 * Cp * P
  bytes_accessed = 4 * (2 * Cp * P + 2 * 9 * Cp * Cp + 6 * Cp)
  out2d = pl.pallas_call(
      kernel,
      out_shape=jax.ShapeDtypeStruct((Cp, P), jnp.float32),
      in_specs=[vmem] * 9,
      out_specs=vmem,
      compiler_params=pltpu.CompilerParams(vmem_limit_bytes=32 * 1024 * 1024),
      cost_estimate=pl.CostEstimate(flops=flops, transcendentals=2 * Cp,
                                    bytes_accessed=bytes_accessed),
  )(x2d, w1, b1, colpad(bn1_g), colpad(bn1_b),
    w2, b2, colpad(bn2_g), colpad(bn2_b))

  return (out2d[:C].reshape(C, N, H, W).transpose(1, 0, 2, 3)
          .astype(x_nchw.dtype))


# ---------------------------------------------------------------------------
# Pure-JAX reference (for correctness checking of the Pallas kernel).
# ---------------------------------------------------------------------------
def _ref_forward(x, params, *, weight=0.5, eps=1e-5):
  (dw1_w, dw1_b, pw1_w, pw1_b, bn1_g, bn1_b,
   dw2_w, dw2_b, pw2_w, pw2_b, bn2_g, bn2_b) = params
  N, C, H, W = x.shape

  def dsconv(t, dw_w, dw_b, pw_w, pw_b):
    d = jax.lax.conv_general_dilated(
        t, dw_w, window_strides=(1, 1), padding=((1, 1), (1, 1)),
        dimension_numbers=("NCHW", "OIHW", "NCHW"),
        feature_group_count=C) + dw_b.reshape(1, C, 1, 1)
    return (jnp.einsum("nchw,oc->nohw", d, pw_w.reshape(C, C))
            + pw_b.reshape(1, C, 1, 1))

  def bn(t, g, b):
    mean = jnp.mean(t, axis=(0, 2, 3), keepdims=True)
    var = jnp.mean((t - mean) ** 2, axis=(0, 2, 3), keepdims=True)
    return ((t - mean) * jax.lax.rsqrt(var + eps) * g.reshape(1, C, 1, 1)
            + b.reshape(1, C, 1, 1))

  y = jnp.maximum(bn(dsconv(x, dw1_w, dw1_b, pw1_w, pw1_b), bn1_g, bn1_b), 0.0)
  y = bn(dsconv(y, dw2_w, dw2_b, pw2_w, pw2_b), bn2_g, bn2_b)
  return jnp.maximum(y + weight * x, 0.0)


if __name__ == "__main__":
  jax.config.update("jax_default_matmul_precision", "highest")

  N, C, H, W = 2, 4, 16, 16    # in_channels == out_channels (residual add)
  key = jax.random.PRNGKey(0)
  keys = jax.random.split(key, 13)

  x = jax.random.normal(keys[0], (N, C, H, W), jnp.float32)

  def nrm(k, shape, scale=0.1):
    return scale * jax.random.normal(k, shape, jnp.float32)

  params = (
      nrm(keys[1], (C, 1, 3, 3)),    # conv1.depthwise.weight
      nrm(keys[2], (C,)),            # conv1.depthwise.bias
      nrm(keys[3], (C, C, 1, 1)),    # conv1.pointwise.weight
      nrm(keys[4], (C,)),            # conv1.pointwise.bias
      1.0 + nrm(keys[5], (C,)),      # bn1.weight (gamma)
      nrm(keys[6], (C,)),            # bn1.bias (beta)
      nrm(keys[7], (C, 1, 3, 3)),    # conv2.depthwise.weight
      nrm(keys[8], (C,)),            # conv2.depthwise.bias
      nrm(keys[9], (C, C, 1, 1)),    # conv2.pointwise.weight
      nrm(keys[10], (C,)),           # conv2.pointwise.bias
      1.0 + nrm(keys[11], (C,)),     # bn2.weight (gamma)
      nrm(keys[12], (C,)),           # bn2.bias (beta)
  )

  out = jax.block_until_ready(residual_block(x, params, weight=0.5))
  ref = _ref_forward(x, params, weight=0.5)

  if not jnp.allclose(out, ref, atol=1e-3, rtol=1e-3):
    err = float(jnp.max(jnp.abs(out - ref)))
    raise AssertionError(f"Pallas kernel does not match reference "
                         f"(max |err| = {err})")
  print("KERNEL_OK")
</pallas_src>

<mosaic_0001>
module attributes {stable_mosaic.version = 11 : i64} {
  func.func @probe(%arg0: memref<8x256xf32, #tpu.memory_space<vmem>>, %arg1: memref<8x256xf32, #tpu.memory_space<vmem>>) attributes {dimension_semantics = [], scalar_prefetch = 0 : i64, scratch_operands = 0 : i64, tpu.core_type = #tpu.core_type<tc>} {
    %c0 = arith.constant 0 : index
    %c0_0 = arith.constant 0 : index
    %0 = vector.load %arg0[%c0, %c0_0] : memref<8x256xf32, #tpu.memory_space<vmem>>, vector<8x256xf32>
    %c3_i32 = arith.constant 3 : i32
    %1 = tpu.dynamic_rotate %0 by %c3_i32 dim 1 : vector<8x256xf32>, i32 -> vector<8x256xf32>
    %c0_1 = arith.constant 0 : index
    %c0_2 = arith.constant 0 : index
    %2 = vector.load %arg1[%c0_1, %c0_2] : memref<8x256xf32, #tpu.memory_space<vmem>>, vector<8x256xf32>
    tpu.vector_store %arg1[%c0_1, %c0_2], %1 {strides = array<i32>} : memref<8x256xf32, #tpu.memory_space<vmem>>, vector<8x256xf32>,
    return
  }
}

</mosaic_0001>

<llo_original>
// kernel: tpu_custom_call.1
$region0: #{tpu_custom_call.1}
  #allocation0 [shape = 'u32[]', space=smem, size = 0x4, offset = 0x4, fixed_abs, tag = 'smem constant byte address 0x4 - core index']
  #allocation1 [shape = 'u32[144,128]{1,0:T(1,128)}', space=vmem, size = 0x12000, scoped, tag = 'internal scratch']
  %s0 = inlined_call_operand.hbm [shape: f32[8,256], index: 0, kind: input, shape index: {}]
  %s1 = inlined_call_operand.hbm [shape: f32[8,256], index: 1, kind: output, shape index: {}]
  %s2 = sld [smem:[#allocation0]]
  $region18: #{tpu_custom_call.1} parent=0
    _
  %s4 = ssub.s32 1, %s2
  %s5 = scalar_select 0, %s4, %s2
  $region1: #{tpu_custom_call.1} parent=0
    #allocation2 [shape = 'u8[8192]{0}', space=vmem, size = 0x2000, scoped, tag = 'input window, operand 0, single buffered']
    #allocation3 [shape = 's32[1]{0}', space=sflag, size = 0x4, scoped, tag = 'scoped memory for tpu_custom_call.1']
    #allocation4 [shape = 's32[1]{0}', space=sflag, size = 0x4, scoped, tag = 'scoped memory for tpu_custom_call.1']
    #allocation5 [shape = 'u8[8192]{0}', space=vmem, size = 0x2000, scoped, tag = 'output window, operand 0, single buffered']
    %6 = vsyncpa [#allocation3], 0
    %7 = vsyncpa [#allocation4], 0
    // Predicated region
    $region2: #{tpu_custom_call.1} parent=1 // pred_check
      _
    $region3: #{tpu_custom_call.1} parent=1 // pred_check_branch
      %9 = sbr.rel (0) target = $region5
    $region4: #{tpu_custom_call.1} parent=1 // pred_region
      %s11 = ssub.s32 256, 256
      %12 = vsyncadd [#allocation3], %s11
      %s14 = sshll.u32 [#allocation2], 4
      %s15 = int_to_ptr.vmem [resolvable:$true] %s14
      %17 = dma.hbm_to_vmem [thread:$0]  %s0, 256, %s15, [#allocation3]
    $region5: #{tpu_custom_call.1} parent=1 // pred_fallthru
      _
    // Predicated region
    $region6: #{tpu_custom_call.1} parent=1 // pred_check
      _
    $region7: #{tpu_custom_call.1} parent=1 // pred_check_branch
      %19 = sbr.rel (0) target = $region9
    $region8: #{tpu_custom_call.1} parent=1 // pred_region
      %20 = dma.done [#allocation3], 256
    $region9: #{tpu_custom_call.1} parent=1 // pred_fallthru
      _
    %v21 = vld [vmem:[#allocation2] sm:$0xff]
    %v22 = vld [vmem:[#allocation2 + $0x8] sm:$0xff]
    %23 = vrot.lane.b32.xlu0 %v21, 3
    %v24 = vpop.permute.xlu0 %23
    %25 = vrot.lane.b32.xlu0 %v22, 3
    %v26 = vpop.permute.xlu0 %25
    %v27 = vlaneseq
    %v28 = vand.u32 %v27, 127
    %vm29 = vcmp.lt.s32.totalorder %v28, 3
    %v30 = vsel %vm29, %v24, %v26
    %v31 = vsel %vm29, %v26, %v24
    %32 = vst [vmem:[#allocation5] sm:$0xff] %v31
    %33 = vst [vmem:[#allocation5 + $0x8] sm:$0xff] %v30
    // Predicated region
    $region10: #{tpu_custom_call.1} parent=1 // pred_check
      _
    $region11: #{tpu_custom_call.1} parent=1 // pred_check_branch
      %35 = sbr.rel (0) target = $region13
    $region12: #{tpu_custom_call.1} parent=1 // pred_region
      %s37 = ssub.s32 256, 256
      %38 = vsyncadd [#allocation4], %s37
      %s40 = sshll.u32 [#allocation5], 4
      %s41 = int_to_ptr.vmem [resolvable:$true] %s40
      %43 = dma.vmem_to_hbm [thread:$0]  %s41, 256, %s1, [#allocation4]
    $region13: #{tpu_custom_call.1} parent=1 // pred_fallthru
      _
    // Predicated region
    $region14: #{tpu_custom_call.1} parent=1 // pred_check
      _
    $region15: #{tpu_custom_call.1} parent=1 // pred_check_branch
      %45 = sbr.rel (0) target = $region17
    $region16: #{tpu_custom_call.1} parent=1 // pred_region
      %46 = dma.done [#allocation4], 256
    $region17: #{tpu_custom_call.1} parent=1 // pred_fallthru
      _
    %47 = vsyncpa [#allocation3], 1
    %48 = vsyncpa [#allocation4], 1

</llo_original>
